<compile_context>
chip_gen: v7x
topology: tpu7x:2x2x1
jax: 0.10.0
libtpu: 0.0.40
codegen_flags: <defaults>
</compile_context>

<pallas_src>
import math

import jax
import jax.numpy as jnp
from jax import lax
from jax.experimental import pallas as pl
from jax.experimental.pallas import tpu as pltpu


def _nca_kernel(scale_ref, x_ref, at_ref, yrow_ref, ycol_ref, tx_ref, loss_ref):
    scale = scale_ref[0]                                  # f32 scalar from SMEM
    x = x_ref[...].astype(jnp.float32)                    # (B, D)
    a_t = at_ref[...].astype(jnp.float32)                 # (O, D)
    B = x.shape[0]

    # Projection tx = x @ A, written as a contract-last-dims matmul against
    # A^T (the well-supported "q @ k^T" form).  f32 accumulation on the MXU.
    tx = lax.dot_general(x, a_t, (((1,), (1,)), ((), ())),
                         preferred_element_type=jnp.float32)       # (B, O)
    tx_ref[...] = tx.astype(tx_ref.dtype)

    # Lane-dense keys (O, B): emitted straight from the projection operands
    # (second tiny matmul) instead of transposing tx -> no XLU transpose and
    # the B axis stays on lanes.
    keysT = lax.dot_general(a_t, x, (((1,), (1,)), ((), ())),
                            preferred_element_type=jnp.float32)    # (O, B)

    # logits_ij = -scale * ||q_i - k_j||^2
    #           = 2*scale*<q_i,k_j> - scale*||k_j||^2 - scale*||q_i||^2
    # The last term is a per-row constant -> cancels in the softmax -> dropped.
    # scale is folded into the matmul lhs (no (B, B) multiply).
    gram2s = jnp.dot(tx * (jnp.float32(2.0) * scale), keysT,
                     preferred_element_type=jnp.float32)           # (B, B)
    ksq_s = jnp.sum(keysT * keysT, axis=0, keepdims=True) * scale  # (1, B)
    logits = gram2s - ksq_s                                        # (B, B)

    # Exclude self comparisons (== the torch gather dropping column j == i).
    # One (1, B) lane iota vs one (B, 1) sublane iota; no (B, B) int32 temps.
    col = lax.broadcasted_iota(jnp.int32, (1, B), 1)
    row = lax.broadcasted_iota(jnp.int32, (B, 1), 0)
    logits = jnp.where(col == row, jnp.float32(-1e30), logits)

    # Numerically stable softmax; p_ij is never materialized.
    m = jnp.max(logits, axis=1, keepdims=True)                     # (B, 1)
    e = jnp.exp(logits - m)                                        # (B, B)
    denom = jnp.sum(e, axis=1, keepdims=True)                      # (B, 1)

    same = ycol_ref[...] == yrow_ref[...]                          # (B, B) bool
    numer = jnp.sum(jnp.where(same, e, jnp.float32(0.0)),
                    axis=1, keepdims=True)                         # (B, 1)

    # Per-row divide: EUP approximate reciprocal + one Newton step on a (B, 1)
    # vector (keeps f32 accuracy, no (B, B) division).
    r = pl.reciprocal(denom, approx=True)
    r = r * (jnp.float32(2.0) - denom * r)
    p_i = jnp.clip(numer * r, 1e-5, 1.0 - 1e-5)                    # (B, 1)

    # classification_loss = mean(-log p_i), folded into the kernel so there is
    # no trailing XLA reduction or (B, 1) HBM round-trip.
    nll = -jnp.log(p_i)                                            # (B, 1)
    loss_ref[...] = jnp.sum(nll, axis=0, keepdims=True) * jnp.float32(1.0 / B)


def nca_forward(x, A, y, scale=1.0):
    """Fused Pallas NCA forward. Returns (classification_loss, transformed_x)."""
    B, D = x.shape
    O = A.shape[1]
    x = x.astype(jnp.float32)
    a_t = jnp.transpose(A.astype(jnp.float32))           # (O, D), parameter-sized
    y_row = y.reshape(1, B).astype(jnp.int32)             # key labels, lane-dense
    y_col = y.reshape(B, 1).astype(jnp.int32)             # query labels
    scale_arr = jnp.asarray(scale, dtype=jnp.float32).reshape(1)   # runtime SMEM scalar

    tx, loss = pl.pallas_call(
        _nca_kernel,
        grid=(1,),   # B <= max_batch_size: whole problem resident in one step
        in_specs=[
            pl.BlockSpec(memory_space=pltpu.MemorySpace.SMEM),   # scale (1,)
            pl.BlockSpec((B, D), lambda i: (0, 0)),              # x
            pl.BlockSpec((O, D), lambda i: (0, 0)),              # A^T
            pl.BlockSpec((1, B), lambda i: (0, 0)),              # key labels
            pl.BlockSpec((B, 1), lambda i: (0, 0)),              # query labels
        ],
        out_specs=[
            pl.BlockSpec((B, O), lambda i: (0, 0)),              # transformed_x
            pl.BlockSpec((1, 1), lambda i: (0, 0)),              # mean nll
        ],
        out_shape=(
            jax.ShapeDtypeStruct((B, O), jnp.float32),
            jax.ShapeDtypeStruct((1, 1), jnp.float32),
        ),
        compiler_params=pltpu.CompilerParams(
            dimension_semantics=("arbitrary",),
        ),
    )(scale_arr, x, a_t, y_row, y_col)

    return loss[0, 0], tx


def nca_reference(x, A, y, scale=1.0):
    """Pure-JAX replica of the PyTorch forward (including the explicit gather)."""
    B = x.shape[0]
    tx = jnp.dot(x, A, precision=lax.Precision.HIGHEST)
    d2 = jnp.sum((tx[:, None, :] - tx[None, :, :]) ** 2, axis=-1)
    logits = -d2
    idx = jnp.asarray([[j for j in range(B) if j != i] for i in range(B)],
                      dtype=jnp.int32)                     # (B, B-1)
    lm = jnp.take_along_axis(logits, idx, axis=1) * scale
    lm = lm - jnp.max(lm, axis=1, keepdims=True)
    e = jnp.exp(lm)
    p = e / jnp.sum(e, axis=1, keepdims=True)
    ymask = jnp.take_along_axis(y[:, None] == y[None, :], idx, axis=1)
    p_i = jnp.clip(jnp.sum(p * ymask.astype(jnp.float32), axis=1), 1e-5, 1.0 - 1e-5)
    return -jnp.mean(jnp.log(p_i)), tx


if __name__ == "__main__":
    # Small shapes consistent with the module (max_batch_size default is 128).
    B, input_dim, output_dim = 128, 32, 2
    scale = 0.5

    key = jax.random.PRNGKey(0)
    kx, ka, ky = jax.random.split(key, 3)

    x = jax.random.normal(kx, (B, input_dim), dtype=jnp.float32)
    # init_method='random': A = randn(input_dim, output_dim) / sqrt(input_dim)
    A = jax.random.normal(ka, (input_dim, output_dim),
                          dtype=jnp.float32) / math.sqrt(input_dim)
    y = jax.random.randint(ky, (B,), 0, 4, dtype=jnp.int32)

    loss, tx = nca_forward(x, A, y, scale=scale)
    loss = jax.block_until_ready(loss)
    tx = jax.block_until_ready(tx)

    # Sanity check against the plain-JAX replica of the torch semantics.
    loss_ref, tx_ref = nca_reference(x, A, y, scale=scale)
    assert jnp.allclose(tx, tx_ref, atol=1e-4, rtol=1e-4), "transformed_x mismatch"
    # Tolerance covers the approx-reciprocal(+Newton) path and the gram-vs-direct
    # squared-distance floating-point differences.
    assert jnp.allclose(loss, loss_ref, atol=5e-4, rtol=5e-4), "loss mismatch"

    print("KERNEL_OK")
</pallas_src>

<mosaic_0001>
module attributes {stable_mosaic.version = 11 : i64} {
  func.func @_nca_kernel(%arg0: i32, %arg1: memref<1xf32, #tpu.memory_space<smem>>, %arg2: memref<128x32xf32, #tpu.memory_space<vmem>>, %arg3: memref<2x32xf32, #tpu.memory_space<vmem>>, %arg4: memref<1x128xi32, #tpu.memory_space<vmem>>, %arg5: memref<128x1xi32, #tpu.memory_space<vmem>>, %arg6: memref<128x2xf32, #tpu.memory_space<vmem>>, %arg7: memref<1x1xf32, #tpu.memory_space<vmem>>) attributes {dimension_semantics = [#tpu.dimension_semantics<arbitrary>], iteration_bounds = array<i64: 1>, scalar_prefetch = 0 : i64, scratch_operands = 0 : i64, tpu.core_type = #tpu.core_type<tc>, window_params = [{transform_indices = @transform_0, window_bounds = array<i64: 1>}, {pipeline_mode = #tpu.pipeline_mode<synchronous>, transform_indices = @transform_1, window_bounds = array<i64: 128, 32>}, {pipeline_mode = #tpu.pipeline_mode<synchronous>, transform_indices = @transform_2, window_bounds = array<i64: 2, 32>}, {pipeline_mode = #tpu.pipeline_mode<synchronous>, transform_indices = @transform_3, window_bounds = array<i64: 1, 128>}, {pipeline_mode = #tpu.pipeline_mode<synchronous>, transform_indices = @transform_4, window_bounds = array<i64: 128, 1>}, {pipeline_mode = #tpu.pipeline_mode<synchronous>, transform_indices = @transform_5, window_bounds = array<i64: 128, 2>}, {pipeline_mode = #tpu.pipeline_mode<synchronous>, transform_indices = @transform_6, window_bounds = array<i64: 1, 1>}]} {
    %c0 = arith.constant 0 : index
    %0 = memref.load %arg1[%c0] : memref<1xf32, #tpu.memory_space<smem>>
    %c0_0 = arith.constant 0 : index
    %c0_1 = arith.constant 0 : index
    %1 = vector.load %arg2[%c0_0, %c0_1] : memref<128x32xf32, #tpu.memory_space<vmem>>, vector<128x32xf32>
    %c0_2 = arith.constant 0 : index
    %c0_3 = arith.constant 0 : index
    %2 = vector.load %arg3[%c0_2, %c0_3] : memref<2x32xf32, #tpu.memory_space<vmem>>, vector<2x32xf32>
    %cst = arith.constant dense<0.000000e+00> : vector<128x2xf32>
    %3 = tpu.matmul %1, %2, %cst {dimension_numbers = #tpu.dot_dimension_numbers<[1], [1], [0], [0], [0, 0, 1, 0], [], []>} : vector<128x32xf32>, vector<2x32xf32>, vector<128x2xf32> -> vector<128x2xf32>
    %c0_4 = arith.constant 0 : index
    %c0_5 = arith.constant 0 : index
    %4 = vector.load %arg6[%c0_4, %c0_5] : memref<128x2xf32, #tpu.memory_space<vmem>>, vector<128x2xf32>
    tpu.vector_store %arg6[%c0_4, %c0_5], %3 {strides = array<i32>} : memref<128x2xf32, #tpu.memory_space<vmem>>, vector<128x2xf32>,
    %cst_6 = arith.constant dense<0.000000e+00> : vector<2x128xf32>
    %5 = tpu.matmul %2, %1, %cst_6 {dimension_numbers = #tpu.dot_dimension_numbers<[1], [1], [0], [0], [0, 0, 1, 0], [], []>} : vector<2x32xf32>, vector<128x32xf32>, vector<2x128xf32> -> vector<2x128xf32>
    %cst_7 = arith.constant 2.000000e+00 : f32
    %6 = arith.mulf %cst_7, %0 : f32
    %7 = vector.broadcast %6 : f32 to vector<128x2xf32>
    %8 = arith.mulf %3, %7 : vector<128x2xf32>
    %cst_8 = arith.constant dense<0.000000e+00> : vector<128x128xf32>
    %9 = tpu.matmul %8, %5, %cst_8 {dimension_numbers = #tpu.dot_dimension_numbers<[1], [0], [0], [1], [0, 0, 1, 1], [], []>} : vector<128x2xf32>, vector<2x128xf32>, vector<128x128xf32> -> vector<128x128xf32>
    %10 = arith.mulf %5, %5 : vector<2x128xf32>
    %cst_9 = arith.constant dense<0.000000e+00> : vector<128xf32>
    %11 = vector.multi_reduction <add>, %10, %cst_9 [0] : vector<2x128xf32> to vector<128xf32>
    %12 = vector.shape_cast %11 : vector<128xf32> to vector<1x128xf32>
    %13 = vector.broadcast %0 : f32 to vector<1x128xf32>
    %14 = arith.mulf %12, %13 : vector<1x128xf32>
    %15 = vector.broadcast %14 : vector<1x128xf32> to vector<128x128xf32>
    %16 = arith.subf %9, %15 : vector<128x128xf32>
    %17 = tpu.iota {dimensions = array<i32: 1>} : vector<1x128xi32>
    %18 = tpu.iota {dimensions = array<i32: 0>} : vector<128x1xi32>
    %19 = vector.broadcast %17 : vector<1x128xi32> to vector<128x128xi32>
    %20 = vector.broadcast %18 : vector<128x1xi32> to vector<128x128xi32>
    %21 = arith.cmpi eq, %19, %20 : vector<128x128xi32>
    %cst_10 = arith.constant -1.000000e+30 : f32
    %22 = vector.broadcast %cst_10 : f32 to vector<128x128xf32>
    %23 = arith.select %21, %22, %16 : vector<128x128xi1>, vector<128x128xf32>
    %cst_11 = arith.constant dense<0xFF800000> : vector<128xf32>
    %24 = vector.multi_reduction <maximumf>, %23, %cst_11 [1] : vector<128x128xf32> to vector<128xf32>
    %25 = vector.shape_cast %24 : vector<128xf32> to vector<128x1xf32>
    %26 = vector.broadcast %25 : vector<128x1xf32> to vector<128x128xf32>
    %27 = arith.subf %23, %26 : vector<128x128xf32>
    %28 = math.exp %27 : vector<128x128xf32>
    %cst_12 = arith.constant dense<0.000000e+00> : vector<128xf32>
    %29 = vector.multi_reduction <add>, %28, %cst_12 [1] : vector<128x128xf32> to vector<128xf32>
    %30 = vector.shape_cast %29 : vector<128xf32> to vector<128x1xf32>
    %c0_13 = arith.constant 0 : index
    %c0_14 = arith.constant 0 : index
    %31 = vector.load %arg5[%c0_13, %c0_14] : memref<128x1xi32, #tpu.memory_space<vmem>>, vector<128x1xi32>
    %c0_15 = arith.constant 0 : index
    %c0_16 = arith.constant 0 : index
    %32 = vector.load %arg4[%c0_15, %c0_16] : memref<1x128xi32, #tpu.memory_space<vmem>>, vector<1x128xi32>
    %33 = vector.broadcast %31 : vector<128x1xi32> to vector<128x128xi32>
    %34 = vector.broadcast %32 : vector<1x128xi32> to vector<128x128xi32>
    %35 = arith.cmpi eq, %33, %34 : vector<128x128xi32>
    %cst_17 = arith.constant 0.000000e+00 : f32
    %36 = vector.broadcast %cst_17 : f32 to vector<128x128xf32>
    %37 = arith.select %35, %28, %36 : vector<128x128xi1>, vector<128x128xf32>
    %cst_18 = arith.constant dense<0.000000e+00> : vector<128xf32>
    %38 = vector.multi_reduction <add>, %37, %cst_18 [1] : vector<128x128xf32> to vector<128xf32>
    %39 = vector.shape_cast %38 : vector<128xf32> to vector<128x1xf32>
    %40 = tpu.reciprocal %30 {approx = true} : vector<128x1xf32> -> vector<128x1xf32>
    %41 = arith.mulf %30, %40 : vector<128x1xf32>
    %cst_19 = arith.constant 2.000000e+00 : f32
    %42 = vector.broadcast %cst_19 : f32 to vector<128x1xf32>
    %43 = arith.subf %42, %41 : vector<128x1xf32>
    %44 = arith.mulf %40, %43 : vector<128x1xf32>
    %45 = arith.mulf %39, %44 : vector<128x1xf32>
    %cst_20 = arith.constant 9.99999974E-6 : f32
    %cst_21 = arith.constant 0.999989986 : f32
    %46 = vector.broadcast %cst_20 : f32 to vector<128x1xf32>
    %47 = arith.maximumf %46, %45 : vector<128x1xf32>
    %48 = vector.broadcast %cst_21 : f32 to vector<128x1xf32>
    %49 = arith.minimumf %48, %47 : vector<128x1xf32>
    %50 = math.log %49 : vector<128x1xf32>
    %cst_22 = arith.constant 0.000000e+00 : f32
    %51 = vector.broadcast %cst_22 : f32 to vector<128x1xf32>
    %52 = arith.subf %51, %50 : vector<128x1xf32>
    %cst_23 = arith.constant dense<0.000000e+00> : vector<1xf32>
    %53 = vector.multi_reduction <add>, %52, %cst_23 [0] : vector<128x1xf32> to vector<1xf32>
    %54 = vector.shape_cast %53 : vector<1xf32> to vector<1x1xf32>
    %cst_24 = arith.constant 7.812500e-03 : f32
    %55 = vector.broadcast %cst_24 : f32 to vector<1x1xf32>
    %56 = arith.mulf %54, %55 : vector<1x1xf32>
    %c0_25 = arith.constant 0 : index
    %c0_26 = arith.constant 0 : index
    %57 = vector.load %arg7[%c0_25, %c0_26] : memref<1x1xf32, #tpu.memory_space<vmem>>, vector<1x1xf32>
    tpu.vector_store %arg7[%c0_25, %c0_26], %56 {strides = array<i32>} : memref<1x1xf32, #tpu.memory_space<vmem>>, vector<1x1xf32>,
    return
  }
  func.func @transform_0(%arg0: i32) -> i32 {
    %c0_i32 = arith.constant 0 : i32
    %c0_i32_0 = arith.constant 0 : i32
    return %c0_i32 : i32
  }
  func.func @transform_1(%arg0: i32) -> (i32, i32) {
    %c0_i32 = arith.constant 0 : i32
    %c0_i32_0 = arith.constant 0 : i32
    %c0_i32_1 = arith.constant 0 : i32
    return %c0_i32, %c0_i32_0 : i32, i32
  }
  func.func @transform_2(%arg0: i32) -> (i32, i32) {
    %c0_i32 = arith.constant 0 : i32
    %c0_i32_0 = arith.constant 0 : i32
    %c0_i32_1 = arith.constant 0 : i32
    return %c0_i32, %c0_i32_0 : i32, i32
  }
  func.func @transform_3(%arg0: i32) -> (i32, i32) {
    %c0_i32 = arith.constant 0 : i32
    %c0_i32_0 = arith.constant 0 : i32
    %c0_i32_1 = arith.constant 0 : i32
    return %c0_i32, %c0_i32_0 : i32, i32
  }
  func.func @transform_4(%arg0: i32) -> (i32, i32) {
    %c0_i32 = arith.constant 0 : i32
    %c0_i32_0 = arith.constant 0 : i32
    %c0_i32_1 = arith.constant 0 : i32
    return %c0_i32, %c0_i32_0 : i32, i32
  }
  func.func @transform_5(%arg0: i32) -> (i32, i32) {
    %c0_i32 = arith.constant 0 : i32
    %c0_i32_0 = arith.constant 0 : i32
    %c0_i32_1 = arith.constant 0 : i32
    return %c0_i32, %c0_i32_0 : i32, i32
  }
  func.func @transform_6(%arg0: i32) -> (i32, i32) {
    %c0_i32 = arith.constant 0 : i32
    %c0_i32_0 = arith.constant 0 : i32
    %c0_i32_1 = arith.constant 0 : i32
    return %c0_i32, %c0_i32_0 : i32, i32
  }
}

</mosaic_0001>

<llo_original>
// kernel: tpu_custom_call.1
$region0: #{tpu_custom_call.1}
  #allocation0 [shape = 'u32[]', space=smem, size = 0x4, offset = 0x4, fixed_abs, tag = 'smem constant byte address 0x4 - core index']
  #allocation1 [shape = 'u32[144,128]{1,0:T(1,128)}', space=vmem, size = 0x12000, scoped, tag = 'internal scratch']
  #allocation2 [shape = 'f32[1]{0:T(128)S(6)}', space=smem, size = 0x200, scoped, tag = 'scoped memory for tpu_custom_call.1']
  %s0 = inlined_call_operand.<no memory space> [shape: f32[1], index: 0, kind: input, shape index: {}]
  %s1 = inlined_call_operand.vmem [shape: f32[128,32], index: 1, kind: input, shape index: {}]
  %s2 = inlined_call_operand.vmem [shape: f32[2,32], index: 2, kind: input, shape index: {}]
  %s3 = inlined_call_operand.vmem [shape: s32[1,128], index: 3, kind: input, shape index: {}]
  %s4 = inlined_call_operand.vmem [shape: s32[128,1], index: 4, kind: input, shape index: {}]
  %s5 = inlined_call_operand.vmem [shape: f32[128,2], index: 5, kind: output, shape index: {0}]
  %s6 = inlined_call_operand.hbm [shape: f32[1,1], index: 6, kind: output, shape index: {1}]
  %7 = xla_tuple %s5, %s6
  %s8 = sld [smem:[#allocation0]]
  $region38: #{tpu_custom_call.1} parent=0
    _
  %s10 = ssub.s32 1, %s8
  %s11 = scalar_select 0, %s10, %s8
  %12 = sst [smem:[#allocation2]] %s0
  $region1: #{tpu_custom_call.1} parent=0
    #allocation3 [shape = 'u8[512]{0}', space=vmem, size = 0x400, scoped, tag = 'output window, operand 1, single buffered']
    #allocation4 [shape = 's32[1]{0}', space=sflag, size = 0x4, scoped, tag = 'scoped memory for tpu_custom_call.1']
    %13 = vsyncpa [#allocation4], 0
    // Predicated region
    $region2: #{tpu_custom_call.1} parent=1 // pred_check
      _
    $region3: #{tpu_custom_call.1} parent=1 // pred_check_branch
      %15 = sbr.rel (0) target = $region5
    $region4: #{tpu_custom_call.1} parent=1 // pred_region
      _
    $region5: #{tpu_custom_call.1} parent=1 // pred_fallthru
      _
    // Predicated region
    $region6: #{tpu_custom_call.1} parent=1 // pred_check
      _
    $region7: #{tpu_custom_call.1} parent=1 // pred_check_branch
      %17 = sbr.rel (0) target = $region9
    $region8: #{tpu_custom_call.1} parent=1 // pred_region
      _
    $region9: #{tpu_custom_call.1} parent=1 // pred_fallthru
      _
    // Predicated region
    $region10: #{tpu_custom_call.1} parent=1 // pred_check
      _
    $region11: #{tpu_custom_call.1} parent=1 // pred_check_branch
      %19 = sbr.rel (0) target = $region13
    $region12: #{tpu_custom_call.1} parent=1 // pred_region
      _
    $region13: #{tpu_custom_call.1} parent=1 // pred_fallthru
      _
    // Predicated region
    $region14: #{tpu_custom_call.1} parent=1 // pred_check
      _
    $region15: #{tpu_custom_call.1} parent=1 // pred_check_branch
      %21 = sbr.rel (0) target = $region17
    $region16: #{tpu_custom_call.1} parent=1 // pred_region
      _
    $region17: #{tpu_custom_call.1} parent=1 // pred_fallthru
      _
    // Predicated region
    $region18: #{tpu_custom_call.1} parent=1 // pred_check
      _
    $region19: #{tpu_custom_call.1} parent=1 // pred_check_branch
      %23 = sbr.rel (0) target = $region21
    $region20: #{tpu_custom_call.1} parent=1 // pred_region
      _
    $region21: #{tpu_custom_call.1} parent=1 // pred_fallthru
      _
    %s24 = sld [smem:[#allocation2]]
    %v25 = vld [vmem:[%s1] sm:$0xff]
    %v26 = vld [vmem:[%s1 + $0x8] sm:$0xff]
    %v27 = vld [vmem:[%s1 + $0x10] sm:$0xff]
    %v28 = vld [vmem:[%s1 + $0x18] sm:$0xff]
    %v29 = vld [vmem:[%s1 + $0x20] sm:$0xff]
    %v30 = vld [vmem:[%s1 + $0x28] sm:$0xff]
    %v31 = vld [vmem:[%s1 + $0x30] sm:$0xff]
    %v32 = vld [vmem:[%s1 + $0x38] sm:$0xff]
    %v33 = vld [vmem:[%s1 + $0x40] sm:$0xff]
    %v34 = vld [vmem:[%s1 + $0x48] sm:$0xff]
    %v35 = vld [vmem:[%s1 + $0x50] sm:$0xff]
    %v36 = vld [vmem:[%s1 + $0x58] sm:$0xff]
    %v37 = vld [vmem:[%s1 + $0x60] sm:$0xff]
    %v38 = vld [vmem:[%s1 + $0x68] sm:$0xff]
    %v39 = vld [vmem:[%s1 + $0x70] sm:$0xff]
    %v40 = vld [vmem:[%s1 + $0x78] sm:$0xff]
    %v41 = vld [vmem:[%s2] sm:$0x3]
    %vm42 = vcmask 261120
    %v44 = vsel %vm42, %v25, 0
    %v47 = vsel %vm42, %v26, 0
    %v50 = vsel %vm42, %v27, 0
    %v53 = vsel %vm42, %v28, 0
    %v56 = vsel %vm42, %v29, 0
    %v59 = vsel %vm42, %v30, 0
    %v62 = vsel %vm42, %v31, 0
    %v65 = vsel %vm42, %v32, 0
    %v68 = vsel %vm42, %v33, 0
    %v71 = vsel %vm42, %v34, 0
    %v74 = vsel %vm42, %v35, 0
    %v77 = vsel %vm42, %v36, 0
    %v80 = vsel %vm42, %v37, 0
    %v83 = vsel %vm42, %v38, 0
    %v86 = vsel %vm42, %v39, 0
    %v89 = vsel %vm42, %v40, 0
    %v92 = vsel %vm42, %v41, 0
    %94 = vmatprep.subr.mxu0 0.0
    %95 = vmatpush1.xpose.msra.mxu0 %v92
    %96 = vmatprep.subr.mxu0 0.0
    %97 = vmatpush1.xpose.msra.mxu0 0.0
    %98 = vmatprep.subr.mxu0 0.0
    %99 = vmatpush1.xpose.msra.mxu0 0.0
    %100 = vmatprep.subr.mxu0 0.0
    %101 = vmatpush1.xpose.msra.mxu0 0.0
    %102 = vmatprep.subr.mxu0 0.0
    %103 = vmatpush1.xpose.msra.mxu0 0.0
    %104 = vmatprep.subr.mxu0 0.0
    %105 = vmatpush1.xpose.msra.mxu0 0.0
    %106 = vmatprep.subr.mxu0 0.0
    %107 = vmatpush1.xpose.msra.mxu0 0.0
    %108 = vmatprep.subr.mxu0 0.0
    %109 = vmatpush1.xpose.msra.mxu0 0.0
    %110 = vmatprep.subr.mxu0 0.0
    %111 = vmatpush1.xpose.msra.mxu0 0.0
    %112 = vmatprep.subr.mxu0 0.0
    %113 = vmatpush1.xpose.msra.mxu0 0.0
    %114 = vmatprep.subr.mxu0 0.0
    %115 = vmatpush1.xpose.msra.mxu0 0.0
    %116 = vmatprep.subr.mxu0 0.0
    %117 = vmatpush1.xpose.msra.mxu0 0.0
    %118 = vmatprep.subr.mxu0 0.0
    %119 = vmatpush1.xpose.msra.mxu0 0.0
    %120 = vmatprep.subr.mxu0 0.0
    %121 = vmatpush1.xpose.msra.mxu0 0.0
    %122 = vmatprep.subr.mxu0 0.0
    %123 = vmatpush1.xpose.msra.mxu0 0.0
    %124 = vmatprep.subr.mxu0 0.0
    %125 = vmatpush1.xpose.msra.mxu0 0.0
    %126 = vmatprep.subr.mxu0 0.0
    %127 = vmatpush1.xpose.msra.mxu0 0.0
    %128 = vmatprep.subr.mxu0 0.0
    %129 = vmatpush1.xpose.msra.mxu0 0.0
    %130 = vmatprep.subr.mxu0 0.0
    %131 = vmatpush1.xpose.msra.mxu0 0.0
    %132 = vmatprep.subr.mxu0 0.0
    %133 = vmatpush1.xpose.msra.mxu0 0.0
    %134 = vmatprep.subr.mxu0 0.0
    %135 = vmatpush1.xpose.msra.mxu0 0.0
    %136 = vmatprep.subr.mxu0 0.0
    %137 = vmatpush1.xpose.msra.mxu0 0.0
    %138 = vmatprep.subr.mxu0 0.0
    %139 = vmatpush1.xpose.msra.mxu0 0.0
    %140 = vmatprep.subr.mxu0 0.0
    %141 = vmatpush1.xpose.msra.mxu0 0.0
    %142 = vmatprep.subr.mxu0 0.0
    %143 = vmatpush1.xpose.msra.mxu0 0.0
    %144 = vmatprep.subr.mxu0 0.0
    %145 = vmatpush1.xpose.msra.mxu0 0.0
    %146 = vmatprep.subr.mxu0 0.0
    %147 = vmatpush1.xpose.msra.mxu0 0.0
    %148 = vmatprep.subr.mxu0 0.0
    %149 = vmatpush1.xpose.msra.mxu0 0.0
    %150 = vmatprep.subr.mxu0 0.0
    %151 = vmatpush1.xpose.msra.mxu0 0.0
    %152 = vmatprep.subr.mxu0 0.0
    %153 = vmatpush1.xpose.msra.mxu0 0.0
    %154 = vmatprep.subr.mxu0 0.0
    %155 = vmatpush1.xpose.msra.mxu0 0.0
    %156 = vmatprep.subr.mxu0 0.0
    %157 = vmatpush1.xpose.msra.mxu0 0.0
    %158 = vmatprep.mubr.f32.mxu0 0.0
    %159 = vmatmul.mubr.f32.gmra.mrb[0].mxu0 %v44
    %v160 = vpop.f32.mrb[0].mxu0
    %v161 = vadd.f32 0.0, %v160
    %v162 = vpop.f32.mrb[0].mxu0
    %163 = vmatprep.mubr.f32.mxu0 0.0
    %164 = vmatmul.mubr.f32.gmra.mrb[0].mxu0 %v47
    %v165 = vpop.f32.mrb[0].mxu0
    %v166 = vadd.f32 0.0, %v165
    %v167 = vpop.f32.mrb[0].mxu0
    %168 = vmatprep.mubr.f32.mxu0 0.0
    %169 = vmatmul.mubr.f32.gmra.mrb[0].mxu0 %v50
    %v170 = vpop.f32.mrb[0].mxu0
    %v171 = vadd.f32 0.0, %v170
    %v172 = vpop.f32.mrb[0].mxu0
    %173 = vmatprep.mubr.f32.mxu0 0.0
    %174 = vmatmul.mubr.f32.gmra.mrb[0].mxu0 %v53
    %v175 = vpop.f32.mrb[0].mxu0
    %v176 = vadd.f32 0.0, %v175
    %v177 = vpop.f32.mrb[0].mxu0
    %178 = vmatprep.mubr.f32.mxu0 0.0
    %179 = vmatmul.mubr.f32.gmra.mrb[0].mxu0 %v56
    %v180 = vpop.f32.mrb[0].mxu0
    %v181 = vadd.f32 0.0, %v180
    %v182 = vpop.f32.mrb[0].mxu0
    %183 = vmatprep.mubr.f32.mxu0 0.0
    %184 = vmatmul.mubr.f32.gmra.mrb[0].mxu0 %v59
    %v185 = vpop.f32.mrb[0].mxu0
    %v186 = vadd.f32 0.0, %v185
    %v187 = vpop.f32.mrb[0].mxu0
    %188 = vmatprep.mubr.f32.mxu0 0.0
    %189 = vmatmul.mubr.f32.gmra.mrb[0].mxu0 %v62
    %v190 = vpop.f32.mrb[0].mxu0
    %v191 = vadd.f32 0.0, %v190
    %v192 = vpop.f32.mrb[0].mxu0
    %193 = vmatprep.mubr.f32.mxu0 0.0
    %194 = vmatmul.mubr.f32.gmra.mrb[0].mxu0 %v65
    %v195 = vpop.f32.mrb[0].mxu0
    %v196 = vadd.f32 0.0, %v195
    %v197 = vpop.f32.mrb[0].mxu0
    %198 = vmatprep.mubr.f32.mxu0 0.0
    %199 = vmatmul.mubr.f32.gmra.mrb[0].mxu0 %v68
    %v200 = vpop.f32.mrb[0].mxu0
    %v201 = vadd.f32 0.0, %v200
    %v202 = vpop.f32.mrb[0].mxu0
    %203 = vmatprep.mubr.f32.mxu0 0.0
    %204 = vmatmul.mubr.f32.gmra.mrb[0].mxu0 %v71
    %v205 = vpop.f32.mrb[0].mxu0
    %v206 = vadd.f32 0.0, %v205
    %v207 = vpop.f32.mrb[0].mxu0
    %208 = vmatprep.mubr.f32.mxu0 0.0
    %209 = vmatmul.mubr.f32.gmra.mrb[0].mxu0 %v74
    %v210 = vpop.f32.mrb[0].mxu0
    %v211 = vadd.f32 0.0, %v210
    %v212 = vpop.f32.mrb[0].mxu0
    %213 = vmatprep.mubr.f32.mxu0 0.0
    %214 = vmatmul.mubr.f32.gmra.mrb[0].mxu0 %v77
    %v215 = vpop.f32.mrb[0].mxu0
    %v216 = vadd.f32 0.0, %v215
    %v217 = vpop.f32.mrb[0].mxu0
    %218 = vmatprep.mubr.f32.mxu0 0.0
    %219 = vmatmul.mubr.f32.gmra.mrb[0].mxu0 %v80
    %v220 = vpop.f32.mrb[0].mxu0
    %v221 = vadd.f32 0.0, %v220
    %v222 = vpop.f32.mrb[0].mxu0
    %223 = vmatprep.mubr.f32.mxu0 0.0
    %224 = vmatmul.mubr.f32.gmra.mrb[0].mxu0 %v83
    %v225 = vpop.f32.mrb[0].mxu0
    %v226 = vadd.f32 0.0, %v225
    %v227 = vpop.f32.mrb[0].mxu0
    %228 = vmatprep.mubr.f32.mxu0 0.0
    %229 = vmatmul.mubr.f32.gmra.mrb[0].mxu0 %v86
    %v230 = vpop.f32.mrb[0].mxu0
    %v231 = vadd.f32 0.0, %v230
    %v232 = vpop.f32.mrb[0].mxu0
    %233 = vmatprep.mubr.f32.mxu0 0.0
    %234 = vmatmul.mubr.f32.gmra.mrb[0].mxu0 %v89
    %v235 = vpop.f32.mrb[0].mxu0
    %v236 = vadd.f32 0.0, %v235
    %v237 = vpop.f32.mrb[0].mxu0
    %238 = vdwg.mxu0
    %vm239 = vcmask 15360
    %240 = vst.msk [vmem:[%s5] sm:$0xff] %vm239, %v161
    %241 = vst.msk [vmem:[%s5 + $0x8] sm:$0xff] %vm239, %v166
    %242 = vst.msk [vmem:[%s5 + $0x10] sm:$0xff] %vm239, %v171
    %243 = vst.msk [vmem:[%s5 + $0x18] sm:$0xff] %vm239, %v176
    %244 = vst.msk [vmem:[%s5 + $0x20] sm:$0xff] %vm239, %v181
    %245 = vst.msk [vmem:[%s5 + $0x28] sm:$0xff] %vm239, %v186
    %246 = vst.msk [vmem:[%s5 + $0x30] sm:$0xff] %vm239, %v191
    %247 = vst.msk [vmem:[%s5 + $0x38] sm:$0xff] %vm239, %v196
    %248 = vst.msk [vmem:[%s5 + $0x40] sm:$0xff] %vm239, %v201
    %249 = vst.msk [vmem:[%s5 + $0x48] sm:$0xff] %vm239, %v206
    %250 = vst.msk [vmem:[%s5 + $0x50] sm:$0xff] %vm239, %v211
    %251 = vst.msk [vmem:[%s5 + $0x58] sm:$0xff] %vm239, %v216
    %252 = vst.msk [vmem:[%s5 + $0x60] sm:$0xff] %vm239, %v221
    %253 = vst.msk [vmem:[%s5 + $0x68] sm:$0xff] %vm239, %v226
    %254 = vst.msk [vmem:[%s5 + $0x70] sm:$0xff] %vm239, %v231
    %255 = vst.msk [vmem:[%s5 + $0x78] sm:$0xff] %vm239, %v236
    %256 = vmatprep.subr.mxu0 0.0
    %257 = vmatpush1.xpose.msra.mxu0 %v44
    %258 = vmatprep.subr.mxu0 0.0
    %259 = vmatpush1.xpose.msra.mxu0 %v47
    %260 = vmatprep.subr.mxu0 0.0
    %261 = vmatpush1.xpose.msra.mxu0 %v50
    %262 = vmatprep.subr.mxu0 0.0
    %263 = vmatpush1.xpose.msra.mxu0 %v53
    %264 = vmatprep.subr.mxu0 0.0
    %265 = vmatpush1.xpose.msra.mxu0 %v56
    %266 = vmatprep.subr.mxu0 0.0
    %267 = vmatpush1.xpose.msra.mxu0 %v59
    %268 = vmatprep.subr.mxu0 0.0
    %269 = vmatpush1.xpose.msra.mxu0 %v62
    %270 = vmatprep.subr.mxu0 0.0
    %271 = vmatpush1.xpose.msra.mxu0 %v65
    %272 = vmatprep.subr.mxu0 0.0
    %273 = vmatpush1.xpose.msra.mxu0 %v68
    %274 = vmatprep.subr.mxu0 0.0
    %275 = vmatpush1.xpose.msra.mxu0 %v71
    %276 = vmatprep.subr.mxu0 0.0
    %277 = vmatpush1.xpose.msra.mxu0 %v74
    %278 = vmatprep.subr.mxu0 0.0
    %279 = vmatpush1.xpose.msra.mxu0 %v77
    %280 = vmatprep.subr.mxu0 0.0
    %281 = vmatpush1.xpose.msra.mxu0 %v80
    %282 = vmatprep.subr.mxu0 0.0
    %283 = vmatpush1.xpose.msra.mxu0 %v83
    %284 = vmatprep.subr.mxu0 0.0
    %285 = vmatpush1.xpose.msra.mxu0 %v86
    %286 = vmatprep.subr.mxu0 0.0
    %287 = vmatpush1.xpose.msra.mxu0 %v89
    %288 = vmatprep.subr.mxu0 0.0
    %289 = vmatpush1.xpose.msra.mxu0 0.0
    %290 = vmatprep.subr.mxu0 0.0
    %291 = vmatpush1.xpose.msra.mxu0 0.0
    %292 = vmatprep.subr.mxu0 0.0
    %293 = vmatpush1.xpose.msra.mxu0 0.0
    %294 = vmatprep.subr.mxu0 0.0
    %295 = vmatpush1.xpose.msra.mxu0 0.0
    %296 = vmatprep.subr.mxu0 0.0
    %297 = vmatpush1.xpose.msra.mxu0 0.0
    %298 = vmatprep.subr.mxu0 0.0
    %299 = vmatpush1.xpose.msra.mxu0 0.0
    %300 = vmatprep.subr.mxu0 0.0
    %301 = vmatpush1.xpose.msra.mxu0 0.0
    %302 = vmatprep.subr.mxu0 0.0
    %303 = vmatpush1.xpose.msra.mxu0 0.0
    %304 = vmatprep.subr.mxu0 0.0
    %305 = vmatpush1.xpose.msra.mxu0 0.0
    %306 = vmatprep.subr.mxu0 0.0
    %307 = vmatpush1.xpose.msra.mxu0 0.0
    %308 = vmatprep.subr.mxu0 0.0
    %309 = vmatpush1.xpose.msra.mxu0 0.0
    %310 = vmatprep.subr.mxu0 0.0
    %311 = vmatpush1.xpose.msra.mxu0 0.0
    %312 = vmatprep.subr.mxu0 0.0
    %313 = vmatpush1.xpose.msra.mxu0 0.0
    %314 = vmatprep.subr.mxu0 0.0
    %315 = vmatpush1.xpose.msra.mxu0 0.0
    %316 = vmatprep.subr.mxu0 0.0
    %317 = vmatpush1.xpose.msra.mxu0 0.0
    %318 = vmatprep.subr.mxu0 0.0
    %319 = vmatpush1.xpose.msra.mxu0 0.0
    %320 = vmatprep.mubr.f32.mxu0 0.0
    %321 = vmatmul.mubr.f32.gmra.mrb[0].mxu0 %v92
    %v322 = vpop.f32.mrb[0].mxu0
    %v323 = vadd.f32 0.0, %v322
    %v324 = vpop.f32.mrb[0].mxu0
    %325 = vdwg.mxu0
    %s326 = smul.f32 %s24, 2.0
    %v327 = vstv %s326
    %v328 = vmul.f32 %v161, %v327
    %v329 = vmul.f32 %v166, %v327
    %v330 = vmul.f32 %v171, %v327
    %v331 = vmul.f32 %v176, %v327
    %v332 = vmul.f32 %v181, %v327
    %v333 = vmul.f32 %v186, %v327
    %v334 = vmul.f32 %v191, %v327
    %v335 = vmul.f32 %v196, %v327
    %v336 = vmul.f32 %v201, %v327
    %v337 = vmul.f32 %v206, %v327
    %v338 = vmul.f32 %v211, %v327
    %v339 = vmul.f32 %v216, %v327
    %v340 = vmul.f32 %v221, %v327
    %v341 = vmul.f32 %v226, %v327
    %v342 = vmul.f32 %v231, %v327
    %v343 = vmul.f32 %v236, %v327
    %v345 = vsel %vm239, %v328, 0
    %v348 = vsel %vm239, %v329, 0
    %v351 = vsel %vm239, %v330, 0
    %v354 = vsel %vm239, %v331, 0
    %v357 = vsel %vm239, %v332, 0
    %v360 = vsel %vm239, %v333, 0
    %v363 = vsel %vm239, %v334, 0
    %v366 = vsel %vm239, %v335, 0
    %v369 = vsel %vm239, %v336, 0
    %v372 = vsel %vm239, %v337, 0
    %v375 = vsel %vm239, %v338, 0
    %v378 = vsel %vm239, %v339, 0
    %v381 = vsel %vm239, %v340, 0
    %v384 = vsel %vm239, %v341, 0
    %v387 = vsel %vm239, %v342, 0
    %v390 = vsel %vm239, %v343, 0
    %vm392 = vcmask 1041408
    %v394 = vsel %vm392, %v323, 0
    %396 = vmatprep.subr.mxu0 0.0
    %397 = vmatpush1.msra.mxu0 %v394
    %398 = vmatprep.subr.mxu0 0.0
    %399 = vmatpush1.msra.mxu0 0.0
    %400 = vmatprep.subr.mxu0 0.0
    %401 = vmatpush1.msra.mxu0 0.0
    %402 = vmatprep.subr.mxu0 0.0
    %403 = vmatpush1.msra.mxu0 0.0
    %404 = vmatprep.subr.mxu0 0.0
    %405 = vmatpush1.msra.mxu0 0.0
    %406 = vmatprep.subr.mxu0 0.0
    %407 = vmatpush1.msra.mxu0 0.0
    %408 = vmatprep.subr.mxu0 0.0
    %409 = vmatpush1.msra.mxu0 0.0
    %410 = vmatprep.subr.mxu0 0.0
    %411 = vmatpush1.msra.mxu0 0.0
    %412 = vmatprep.subr.mxu0 0.0
    %413 = vmatpush1.msra.mxu0 0.0
    %414 = vmatprep.subr.mxu0 0.0
    %415 = vmatpush1.msra.mxu0 0.0
    %416 = vmatprep.subr.mxu0 0.0
    %417 = vmatpush1.msra.mxu0 0.0
    %418 = vmatprep.subr.mxu0 0.0
    %419 = vmatpush1.msra.mxu0 0.0
    %420 = vmatprep.subr.mxu0 0.0
    %421 = vmatpush1.msra.mxu0 0.0
    %422 = vmatprep.subr.mxu0 0.0
    %423 = vmatpush1.msra.mxu0 0.0
    %424 = vmatprep.subr.mxu0 0.0
    %425 = vmatpush1.msra.mxu0 0.0
    %426 = vmatprep.subr.mxu0 0.0
    %427 = vmatpush1.msra.mxu0 0.0
    %428 = vmatprep.subr.mxu0 0.0
    %429 = vmatpush1.msra.mxu0 0.0
    %430 = vmatprep.subr.mxu0 0.0
    %431 = vmatpush1.msra.mxu0 0.0
    %432 = vmatprep.subr.mxu0 0.0
    %433 = vmatpush1.msra.mxu0 0.0
    %434 = vmatprep.subr.mxu0 0.0
    %435 = vmatpush1.msra.mxu0 0.0
    %436 = vmatprep.subr.mxu0 0.0
    %437 = vmatpush1.msra.mxu0 0.0
    %438 = vmatprep.subr.mxu0 0.0
    %439 = vmatpush1.msra.mxu0 0.0
    %440 = vmatprep.subr.mxu0 0.0
    %441 = vmatpush1.msra.mxu0 0.0
    %442 = vmatprep.subr.mxu0 0.0
    %443 = vmatpush1.msra.mxu0 0.0
    %444 = vmatprep.subr.mxu0 0.0
    %445 = vmatpush1.msra.mxu0 0.0
    %446 = vmatprep.subr.mxu0 0.0
    %447 = vmatpush1.msra.mxu0 0.0
    %448 = vmatprep.subr.mxu0 0.0
    %449 = vmatpush1.msra.mxu0 0.0
    %450 = vmatprep.subr.mxu0 0.0
    %451 = vmatpush1.msra.mxu0 0.0
    %452 = vmatprep.subr.mxu0 0.0
    %453 = vmatpush1.msra.mxu0 0.0
    %454 = vmatprep.subr.mxu0 0.0
    %455 = vmatpush1.msra.mxu0 0.0
    %456 = vmatprep.subr.mxu0 0.0
    %457 = vmatpush1.msra.mxu0 0.0
    %458 = vmatprep.subr.mxu0 0.0
    %459 = vmatpush1.msra.mxu0 0.0
    %460 = vmatprep.mubr.f32.mxu0 0.0
    %461 = vmatmul.mubr.f32.gmra.mrb[0].mxu0 %v345
    %v462 = vpop.f32.mrb[0].mxu0
    %v463 = vadd.f32 0.0, %v462
    %v464 = vpop.f32.mrb[0].mxu0
    %465 = vmatprep.mubr.f32.mxu0 0.0
    %466 = vmatmul.mubr.f32.gmra.mrb[0].mxu0 %v348
    %v467 = vpop.f32.mrb[0].mxu0
    %v468 = vadd.f32 0.0, %v467
    %v469 = vpop.f32.mrb[0].mxu0
    %470 = vmatprep.mubr.f32.mxu0 0.0
    %471 = vmatmul.mubr.f32.gmra.mrb[0].mxu0 %v351
    %v472 = vpop.f32.mrb[0].mxu0
    %v473 = vadd.f32 0.0, %v472
    %v474 = vpop.f32.mrb[0].mxu0
    %475 = vmatprep.mubr.f32.mxu0 0.0
    %476 = vmatmul.mubr.f32.gmra.mrb[0].mxu0 %v354
    %v477 = vpop.f32.mrb[0].mxu0
    %v478 = vadd.f32 0.0, %v477
    %v479 = vpop.f32.mrb[0].mxu0
    %480 = vmatprep.mubr.f32.mxu0 0.0
    %481 = vmatmul.mubr.f32.gmra.mrb[0].mxu0 %v357
    %v482 = vpop.f32.mrb[0].mxu0
    %v483 = vadd.f32 0.0, %v482
    %v484 = vpop.f32.mrb[0].mxu0
    %485 = vmatprep.mubr.f32.mxu0 0.0
    %486 = vmatmul.mubr.f32.gmra.mrb[0].mxu0 %v360
    %v487 = vpop.f32.mrb[0].mxu0
    %v488 = vadd.f32 0.0, %v487
    %v489 = vpop.f32.mrb[0].mxu0
    %490 = vmatprep.mubr.f32.mxu0 0.0
    %491 = vmatmul.mubr.f32.gmra.mrb[0].mxu0 %v363
    %v492 = vpop.f32.mrb[0].mxu0
    %v493 = vadd.f32 0.0, %v492
    %v494 = vpop.f32.mrb[0].mxu0
    %495 = vmatprep.mubr.f32.mxu0 0.0
    %496 = vmatmul.mubr.f32.gmra.mrb[0].mxu0 %v366
    %v497 = vpop.f32.mrb[0].mxu0
    %v498 = vadd.f32 0.0, %v497
    %v499 = vpop.f32.mrb[0].mxu0
    %500 = vmatprep.mubr.f32.mxu0 0.0
    %501 = vmatmul.mubr.f32.gmra.mrb[0].mxu0 %v369
    %v502 = vpop.f32.mrb[0].mxu0
    %v503 = vadd.f32 0.0, %v502
    %v504 = vpop.f32.mrb[0].mxu0
    %505 = vmatprep.mubr.f32.mxu0 0.0
    %506 = vmatmul.mubr.f32.gmra.mrb[0].mxu0 %v372
    %v507 = vpop.f32.mrb[0].mxu0
    %v508 = vadd.f32 0.0, %v507
    %v509 = vpop.f32.mrb[0].mxu0
    %510 = vmatprep.mubr.f32.mxu0 0.0
    %511 = vmatmul.mubr.f32.gmra.mrb[0].mxu0 %v375
    %v512 = vpop.f32.mrb[0].mxu0
    %v513 = vadd.f32 0.0, %v512
    %v514 = vpop.f32.mrb[0].mxu0
    %515 = vmatprep.mubr.f32.mxu0 0.0
    %516 = vmatmul.mubr.f32.gmra.mrb[0].mxu0 %v378
    %v517 = vpop.f32.mrb[0].mxu0
    %v518 = vadd.f32 0.0, %v517
    %v519 = vpop.f32.mrb[0].mxu0
    %520 = vmatprep.mubr.f32.mxu0 0.0
    %521 = vmatmul.mubr.f32.gmra.mrb[0].mxu0 %v381
    %v522 = vpop.f32.mrb[0].mxu0
    %v523 = vadd.f32 0.0, %v522
    %v524 = vpop.f32.mrb[0].mxu0
    %525 = vmatprep.mubr.f32.mxu0 0.0
    %526 = vmatmul.mubr.f32.gmra.mrb[0].mxu0 %v384
    %v527 = vpop.f32.mrb[0].mxu0
    %v528 = vadd.f32 0.0, %v527
    %v529 = vpop.f32.mrb[0].mxu0
    %530 = vmatprep.mubr.f32.mxu0 0.0
    %531 = vmatmul.mubr.f32.gmra.mrb[0].mxu0 %v387
    %v532 = vpop.f32.mrb[0].mxu0
    %v533 = vadd.f32 0.0, %v532
    %v534 = vpop.f32.mrb[0].mxu0
    %535 = vmatprep.mubr.f32.mxu0 0.0
    %536 = vmatmul.mubr.f32.gmra.mrb[0].mxu0 %v390
    %v537 = vpop.f32.mrb[0].mxu0
    %v538 = vadd.f32 0.0, %v537
    %v539 = vpop.f32.mrb[0].mxu0
    %540 = vdwg.mxu0
    %v541 = vmul.f32 %v323, %v323
    %v542 = vsel %vm392, %v541, 0.0
    %v543 = vrot.slane %v542, 4
    %v544 = vadd.f32 %v542, %v543
    %v545 = vrot.slane %v544, 2
    %v546 = vadd.f32 %v544, %v545
    %v547 = vrot.slane %v546, 1
    %v548 = vadd.f32 %v546, %v547
    %v549 = vstv %s24
    %v550 = vmul.f32 %v548, %v549
    %v551 = vsub.f32 %v463, %v550
    %v552 = vsub.f32 %v468, %v550
    %v553 = vsub.f32 %v473, %v550
    %v554 = vsub.f32 %v478, %v550
    %v555 = vsub.f32 %v483, %v550
    %v556 = vsub.f32 %v488, %v550
    %v557 = vsub.f32 %v493, %v550
    %v558 = vsub.f32 %v498, %v550
    %v559 = vsub.f32 %v503, %v550
    %v560 = vsub.f32 %v508, %v550
    %v561 = vsub.f32 %v513, %v550
    %v562 = vsub.f32 %v518, %v550
    %v563 = vsub.f32 %v523, %v550
    %v564 = vsub.f32 %v528, %v550
    %v565 = vsub.f32 %v533, %v550
    %v566 = vsub.f32 %v538, %v550
    %v567 = vlaneseq
    %v568 = vand.u32 %v567, 127
    %v569 = vlaneseq
    %v570 = vshrl.u32 %v569, 7
    %v571 = vadd.s32 %v570, 8
    %v572 = vadd.s32 %v570, 16
    %v573 = vadd.s32 %v570, 24
    %v574 = vadd.s32 %v570, 32
    %v575 = vadd.s32 %v570, 40
    %v576 = vadd.s32 %v570, 48
    %v577 = vadd.s32 %v570, 56
    %v578 = vadd.s32 %v570, 64
    %v579 = vadd.s32 %v570, 72
    %v580 = vadd.s32 %v570, 80
    %v581 = vadd.s32 %v570, 88
    %v582 = vadd.s32 %v570, 96
    %v583 = vadd.s32 %v570, 104
    %v584 = vadd.s32 %v570, 112
    %v585 = vadd.s32 %v570, 120
    %vm586 = vcmp.eq.s32.totalorder %v568, %v570
    %vm587 = vcmp.eq.s32.totalorder %v568, %v571
    %vm588 = vcmp.eq.s32.totalorder %v568, %v572
    %vm589 = vcmp.eq.s32.totalorder %v568, %v573
    %vm590 = vcmp.eq.s32.totalorder %v568, %v574
    %vm591 = vcmp.eq.s32.totalorder %v568, %v575
    %vm592 = vcmp.eq.s32.totalorder %v568, %v576
    %vm593 = vcmp.eq.s32.totalorder %v568, %v577
    %vm594 = vcmp.eq.s32.totalorder %v568, %v578
    %vm595 = vcmp.eq.s32.totalorder %v568, %v579
    %vm596 = vcmp.eq.s32.totalorder %v568, %v580
    %vm597 = vcmp.eq.s32.totalorder %v568, %v581
    %vm598 = vcmp.eq.s32.totalorder %v568, %v582
    %vm599 = vcmp.eq.s32.totalorder %v568, %v583
    %vm600 = vcmp.eq.s32.totalorder %v568, %v584
    %vm601 = vcmp.eq.s32.totalorder %v568, %v585
    %v602 = vsel %vm586, -1e+30, %v551
    %v603 = vsel %vm587, -1e+30, %v552
    %v604 = vsel %vm588, -1e+30, %v553
    %v605 = vsel %vm589, -1e+30, %v554
    %v606 = vsel %vm590, -1e+30, %v555
    %v607 = vsel %vm591, -1e+30, %v556
    %v608 = vsel %vm592, -1e+30, %v557
    %v609 = vsel %vm593, -1e+30, %v558
    %v610 = vsel %vm594, -1e+30, %v559
    %v611 = vsel %vm595, -1e+30, %v560
    %v612 = vsel %vm596, -1e+30, %v561
    %v613 = vsel %vm597, -1e+30, %v562
    %v614 = vsel %vm598, -1e+30, %v563
    %v615 = vsel %vm599, -1e+30, %v564
    %v616 = vsel %vm600, -1e+30, %v565
    %v617 = vsel %vm601, -1e+30, %v566
    %618 = vmax.xlane.f32.xlu0 %v602
    %v619 = vpop.xlane.xlu0 %618
    %620 = vmax.xlane.f32.xlu0 %v603
    %v621 = vpop.xlane.xlu0 %620
    %622 = vmax.xlane.f32.xlu0 %v604
    %v623 = vpop.xlane.xlu0 %622
    %624 = vmax.xlane.f32.xlu0 %v605
    %v625 = vpop.xlane.xlu0 %624
    %626 = vmax.xlane.f32.xlu0 %v606
    %v627 = vpop.xlane.xlu0 %626
    %628 = vmax.xlane.f32.xlu0 %v607
    %v629 = vpop.xlane.xlu0 %628
    %630 = vmax.xlane.f32.xlu0 %v608
    %v631 = vpop.xlane.xlu0 %630
    %632 = vmax.xlane.f32.xlu0 %v609
    %v633 = vpop.xlane.xlu0 %632
    %634 = vmax.xlane.f32.xlu0 %v610
    %v635 = vpop.xlane.xlu0 %634
    %636 = vmax.xlane.f32.xlu0 %v611
    %v637 = vpop.xlane.xlu0 %636
    %638 = vmax.xlane.f32.xlu0 %v612
    %v639 = vpop.xlane.xlu0 %638
    %640 = vmax.xlane.f32.xlu0 %v613
    %v641 = vpop.xlane.xlu0 %640
    %642 = vmax.xlane.f32.xlu0 %v614
    %v643 = vpop.xlane.xlu0 %642
    %644 = vmax.xlane.f32.xlu0 %v615
    %v645 = vpop.xlane.xlu0 %644
    %646 = vmax.xlane.f32.xlu0 %v616
    %v647 = vpop.xlane.xlu0 %646
    %648 = vmax.xlane.f32.xlu0 %v617
    %v649 = vpop.xlane.xlu0 %648
    %v650 = vsub.f32 %v602, %v619
    %v651 = vsub.f32 %v603, %v621
    %v652 = vsub.f32 %v604, %v623
    %v653 = vsub.f32 %v605, %v625
    %v654 = vsub.f32 %v606, %v627
    %v655 = vsub.f32 %v607, %v629
    %v656 = vsub.f32 %v608, %v631
    %v657 = vsub.f32 %v609, %v633
    %v658 = vsub.f32 %v610, %v635
    %v659 = vsub.f32 %v611, %v637
    %v660 = vsub.f32 %v612, %v639
    %v661 = vsub.f32 %v613, %v641
    %v662 = vsub.f32 %v614, %v643
    %v663 = vsub.f32 %v615, %v645
    %v664 = vsub.f32 %v616, %v647
    %v665 = vsub.f32 %v617, %v649
    %v666 = vmul.f32 %v650, 1.442695
    %v667 = vpow.pop %v666
    %v668 = vmul.f32 %v651, 1.442695
    %v669 = vpow.pop %v668
    %v670 = vmul.f32 %v652, 1.442695
    %v671 = vpow.pop %v670
    %v672 = vmul.f32 %v653, 1.442695
    %v673 = vpow.pop %v672
    %v674 = vmul.f32 %v654, 1.442695
    %v675 = vpow.pop %v674
    %v676 = vmul.f32 %v655, 1.442695
    %v677 = vpow.pop %v676
    %v678 = vmul.f32 %v656, 1.442695
    %v679 = vpow.pop %v678
    %v680 = vmul.f32 %v657, 1.442695
    %v681 = vpow.pop %v680
    %v682 = vmul.f32 %v658, 1.442695
    %v683 = vpow.pop %v682
    %v684 = vmul.f32 %v659, 1.442695
    %v685 = vpow.pop %v684
    %v686 = vmul.f32 %v660, 1.442695
    %v687 = vpow.pop %v686
    %v688 = vmul.f32 %v661, 1.442695
    %v689 = vpow.pop %v688
    %v690 = vmul.f32 %v662, 1.442695
    %v691 = vpow.pop %v690
    %v692 = vmul.f32 %v663, 1.442695
    %v693 = vpow.pop %v692
    %v694 = vmul.f32 %v664, 1.442695
    %v695 = vpow.pop %v694
    %v696 = vmul.f32 %v665, 1.442695
    %v697 = vpow.pop %v696
    %698 = vadd.xlane.f32.xlu0 %v667
    %v699 = vpop.xlane.xlu0 %698
    %700 = vadd.xlane.f32.xlu0 %v669
    %v701 = vpop.xlane.xlu0 %700
    %702 = vadd.xlane.f32.xlu0 %v671
    %v703 = vpop.xlane.xlu0 %702
    %704 = vadd.xlane.f32.xlu0 %v673
    %v705 = vpop.xlane.xlu0 %704
    %706 = vadd.xlane.f32.xlu0 %v675
    %v707 = vpop.xlane.xlu0 %706
    %708 = vadd.xlane.f32.xlu0 %v677
    %v709 = vpop.xlane.xlu0 %708
    %710 = vadd.xlane.f32.xlu0 %v679
    %v711 = vpop.xlane.xlu0 %710
    %712 = vadd.xlane.f32.xlu0 %v681
    %v713 = vpop.xlane.xlu0 %712
    %714 = vadd.xlane.f32.xlu0 %v683
    %v715 = vpop.xlane.xlu0 %714
    %716 = vadd.xlane.f32.xlu0 %v685
    %v717 = vpop.xlane.xlu0 %716
    %718 = vadd.xlane.f32.xlu0 %v687
    %v719 = vpop.xlane.xlu0 %718
    %720 = vadd.xlane.f32.xlu0 %v689
    %v721 = vpop.xlane.xlu0 %720
    %722 = vadd.xlane.f32.xlu0 %v691
    %v723 = vpop.xlane.xlu0 %722
    %724 = vadd.xlane.f32.xlu0 %v693
    %v725 = vpop.xlane.xlu0 %724
    %726 = vadd.xlane.f32.xlu0 %v695
    %v727 = vpop.xlane.xlu0 %726
    %728 = vadd.xlane.f32.xlu0 %v697
    %v729 = vpop.xlane.xlu0 %728
    %v730 = vld [vmem:[%s4] sm:$0xff]
    %v731 = vld [vmem:[%s4 + $0x8] sm:$0xff]
    %v732 = vld [vmem:[%s4 + $0x10] sm:$0xff]
    %v733 = vld [vmem:[%s4 + $0x18] sm:$0xff]
    %v734 = vld [vmem:[%s4 + $0x20] sm:$0xff]
    %v735 = vld [vmem:[%s4 + $0x28] sm:$0xff]
    %v736 = vld [vmem:[%s4 + $0x30] sm:$0xff]
    %v737 = vld [vmem:[%s4 + $0x38] sm:$0xff]
    %v738 = vld [vmem:[%s4 + $0x40] sm:$0xff]
    %v739 = vld [vmem:[%s4 + $0x48] sm:$0xff]
    %v740 = vld [vmem:[%s4 + $0x50] sm:$0xff]
    %v741 = vld [vmem:[%s4 + $0x58] sm:$0xff]
    %v742 = vld [vmem:[%s4 + $0x60] sm:$0xff]
    %v743 = vld [vmem:[%s4 + $0x68] sm:$0xff]
    %v744 = vld [vmem:[%s4 + $0x70] sm:$0xff]
    %v745 = vld [vmem:[%s4 + $0x78] sm:$0xff]
    %v746 = vld [vmem:[%s3] sm:$0x1]
    %747 = vset.pattern.permute.xlu0 0
    %748 = vperm.xlu0 %747, %v730
    %v749 = vpop.permute.xlu0 %748
    %750 = vset.pattern.permute.xlu0 0
    %751 = vperm.xlu0 %750, %v731
    %v752 = vpop.permute.xlu0 %751
    %753 = vset.pattern.permute.xlu0 0
    %754 = vperm.xlu0 %753, %v732
    %v755 = vpop.permute.xlu0 %754
    %756 = vset.pattern.permute.xlu0 0
    %757 = vperm.xlu0 %756, %v733
    %v758 = vpop.permute.xlu0 %757
    %759 = vset.pattern.permute.xlu0 0
    %760 = vperm.xlu0 %759, %v734
    %v761 = vpop.permute.xlu0 %760
    %762 = vset.pattern.permute.xlu0 0
    %763 = vperm.xlu0 %762, %v735
    %v764 = vpop.permute.xlu0 %763
    %765 = vset.pattern.permute.xlu0 0
    %766 = vperm.xlu0 %765, %v736
    %v767 = vpop.permute.xlu0 %766
    %768 = vset.pattern.permute.xlu0 0
    %769 = vperm.xlu0 %768, %v737
    %v770 = vpop.permute.xlu0 %769
    %771 = vset.pattern.permute.xlu0 0
    %772 = vperm.xlu0 %771, %v738
    %v773 = vpop.permute.xlu0 %772
    %774 = vset.pattern.permute.xlu0 0
    %775 = vperm.xlu0 %774, %v739
    %v776 = vpop.permute.xlu0 %775
    %777 = vset.pattern.permute.xlu0 0
    %778 = vperm.xlu0 %777, %v740
    %v779 = vpop.permute.xlu0 %778
    %780 = vset.pattern.permute.xlu0 0
    %781 = vperm.xlu0 %780, %v741
    %v782 = vpop.permute.xlu0 %781
    %783 = vset.pattern.permute.xlu0 0
    %784 = vperm.xlu0 %783, %v742
    %v785 = vpop.permute.xlu0 %784
    %786 = vset.pattern.permute.xlu0 0
    %787 = vperm.xlu0 %786, %v743
    %v788 = vpop.permute.xlu0 %787
    %789 = vset.pattern.permute.xlu0 0
    %790 = vperm.xlu0 %789, %v744
    %v791 = vpop.permute.xlu0 %790
    %792 = vset.pattern.permute.xlu0 0
    %793 = vperm.xlu0 %792, %v745
    %v794 = vpop.permute.xlu0 %793
    %v795 = vlaneseq
    %v796 = vshrl.u32 %v795, 7
    %v797 = vsub.s32 0, %v796
    %v798 = vrot.slane %v746, %v797
    %vm799 = vcmp.eq.s32.totalorder %v749, %v798
    %vm800 = vcmp.eq.s32.totalorder %v752, %v798
    %vm801 = vcmp.eq.s32.totalorder %v755, %v798
    %vm802 = vcmp.eq.s32.totalorder %v758, %v798
    %vm803 = vcmp.eq.s32.totalorder %v761, %v798
    %vm804 = vcmp.eq.s32.totalorder %v764, %v798
    %vm805 = vcmp.eq.s32.totalorder %v767, %v798
    %vm806 = vcmp.eq.s32.totalorder %v770, %v798
    %vm807 = vcmp.eq.s32.totalorder %v773, %v798
    %vm808 = vcmp.eq.s32.totalorder %v776, %v798
    %vm809 = vcmp.eq.s32.totalorder %v779, %v798
    %vm810 = vcmp.eq.s32.totalorder %v782, %v798
    %vm811 = vcmp.eq.s32.totalorder %v785, %v798
    %vm812 = vcmp.eq.s32.totalorder %v788, %v798
    %vm813 = vcmp.eq.s32.totalorder %v791, %v798
    %vm814 = vcmp.eq.s32.totalorder %v794, %v798
    %v815 = vsel %vm799, %v667, 0.0
    %v816 = vsel %vm800, %v669, 0.0
    %v817 = vsel %vm801, %v671, 0.0
    %v818 = vsel %vm802, %v673, 0.0
    %v819 = vsel %vm803, %v675, 0.0
    %v820 = vsel %vm804, %v677, 0.0
    %v821 = vsel %vm805, %v679, 0.0
    %v822 = vsel %vm806, %v681, 0.0
    %v823 = vsel %vm807, %v683, 0.0
    %v824 = vsel %vm808, %v685, 0.0
    %v825 = vsel %vm809, %v687, 0.0
    %v826 = vsel %vm810, %v689, 0.0
    %v827 = vsel %vm811, %v691, 0.0
    %v828 = vsel %vm812, %v693, 0.0
    %v829 = vsel %vm813, %v695, 0.0
    %v830 = vsel %vm814, %v697, 0.0
    %831 = vadd.xlane.f32.xlu0 %v815
    %v832 = vpop.xlane.xlu0 %831
    %833 = vadd.xlane.f32.xlu0 %v816
    %v834 = vpop.xlane.xlu0 %833
    %835 = vadd.xlane.f32.xlu0 %v817
    %v836 = vpop.xlane.xlu0 %835
    %837 = vadd.xlane.f32.xlu0 %v818
    %v838 = vpop.xlane.xlu0 %837
    %839 = vadd.xlane.f32.xlu0 %v819
    %v840 = vpop.xlane.xlu0 %839
    %841 = vadd.xlane.f32.xlu0 %v820
    %v842 = vpop.xlane.xlu0 %841
    %843 = vadd.xlane.f32.xlu0 %v821
    %v844 = vpop.xlane.xlu0 %843
    %845 = vadd.xlane.f32.xlu0 %v822
    %v846 = vpop.xlane.xlu0 %845
    %847 = vadd.xlane.f32.xlu0 %v823
    %v848 = vpop.xlane.xlu0 %847
    %849 = vadd.xlane.f32.xlu0 %v824
    %v850 = vpop.xlane.xlu0 %849
    %851 = vadd.xlane.f32.xlu0 %v825
    %v852 = vpop.xlane.xlu0 %851
    %853 = vadd.xlane.f32.xlu0 %v826
    %v854 = vpop.xlane.xlu0 %853
    %855 = vadd.xlane.f32.xlu0 %v827
    %v856 = vpop.xlane.xlu0 %855
    %857 = vadd.xlane.f32.xlu0 %v828
    %v858 = vpop.xlane.xlu0 %857
    %859 = vadd.xlane.f32.xlu0 %v829
    %v860 = vpop.xlane.xlu0 %859
    %861 = vadd.xlane.f32.xlu0 %v830
    %v862 = vpop.xlane.xlu0 %861
    %v863 = vrcp.pop %v699
    %v864 = vrcp.pop %v701
    %v865 = vrcp.pop %v703
    %v866 = vrcp.pop %v705
    %v867 = vrcp.pop %v707
    %v868 = vrcp.pop %v709
    %v869 = vrcp.pop %v711
    %v870 = vrcp.pop %v713
    %v871 = vrcp.pop %v715
    %v872 = vrcp.pop %v717
    %v873 = vrcp.pop %v719
    %v874 = vrcp.pop %v721
    %v875 = vrcp.pop %v723
    %v876 = vrcp.pop %v725
    %v877 = vrcp.pop %v727
    %v878 = vrcp.pop %v729
    %v879 = vmul.f32 %v699, %v863
    %v880 = vmul.f32 %v701, %v864
    %v881 = vmul.f32 %v703, %v865
    %v882 = vmul.f32 %v705, %v866
    %v883 = vmul.f32 %v707, %v867
    %v884 = vmul.f32 %v709, %v868
    %v885 = vmul.f32 %v711, %v869
    %v886 = vmul.f32 %v713, %v870
    %v887 = vmul.f32 %v715, %v871
    %v888 = vmul.f32 %v717, %v872
    %v889 = vmul.f32 %v719, %v873
    %v890 = vmul.f32 %v721, %v874
    %v891 = vmul.f32 %v723, %v875
    %v892 = vmul.f32 %v725, %v876
    %v893 = vmul.f32 %v727, %v877
    %v894 = vmul.f32 %v729, %v878
    %v895 = vsub.f32 2.0, %v879
    %v896 = vsub.f32 2.0, %v880
    %v897 = vsub.f32 2.0, %v881
    %v898 = vsub.f32 2.0, %v882
    %v899 = vsub.f32 2.0, %v883
    %v900 = vsub.f32 2.0, %v884
    %v901 = vsub.f32 2.0, %v885
    %v902 = vsub.f32 2.0, %v886
    %v903 = vsub.f32 2.0, %v887
    %v904 = vsub.f32 2.0, %v888
    %v905 = vsub.f32 2.0, %v889
    %v906 = vsub.f32 2.0, %v890
    %v907 = vsub.f32 2.0, %v891
    %v908 = vsub.f32 2.0, %v892
    %v909 = vsub.f32 2.0, %v893
    %v910 = vsub.f32 2.0, %v894
    %v911 = vmul.f32 %v863, %v895
    %v912 = vmul.f32 %v864, %v896
    %v913 = vmul.f32 %v865, %v897
    %v914 = vmul.f32 %v866, %v898
    %v915 = vmul.f32 %v867, %v899
    %v916 = vmul.f32 %v868, %v900
    %v917 = vmul.f32 %v869, %v901
    %v918 = vmul.f32 %v870, %v902
    %v919 = vmul.f32 %v871, %v903
    %v920 = vmul.f32 %v872, %v904
    %v921 = vmul.f32 %v873, %v905
    %v922 = vmul.f32 %v874, %v906
    %v923 = vmul.f32 %v875, %v907
    %v924 = vmul.f32 %v876, %v908
    %v925 = vmul.f32 %v877, %v909
    %v926 = vmul.f32 %v878, %v910
    %v927 = vmul.f32 %v832, %v911
    %v928 = vmul.f32 %v834, %v912
    %v929 = vmul.f32 %v836, %v913
    %v930 = vmul.f32 %v838, %v914
    %v931 = vmul.f32 %v840, %v915
    %v932 = vmul.f32 %v842, %v916
    %v933 = vmul.f32 %v844, %v917
    %v934 = vmul.f32 %v846, %v918
    %v935 = vmul.f32 %v848, %v919
    %v936 = vmul.f32 %v850, %v920
    %v937 = vmul.f32 %v852, %v921
    %v938 = vmul.f32 %v854, %v922
    %v939 = vmul.f32 %v856, %v923
    %v940 = vmul.f32 %v858, %v924
    %v941 = vmul.f32 %v860, %v925
    %v942 = vmul.f32 %v862, %v926
    %v943 = vmax.f32 %v927, 1e-05
    %v944 = vmax.f32 %v928, 1e-05
    %v945 = vmax.f32 %v929, 1e-05
    %v946 = vmax.f32 %v930, 1e-05
    %v947 = vmax.f32 %v931, 1e-05
    %v948 = vmax.f32 %v932, 1e-05
    %v949 = vmax.f32 %v933, 1e-05
    %v950 = vmax.f32 %v934, 1e-05
    %v951 = vmax.f32 %v935, 1e-05
    %v952 = vmax.f32 %v936, 1e-05
    %v953 = vmax.f32 %v937, 1e-05
    %v954 = vmax.f32 %v938, 1e-05
    %v955 = vmax.f32 %v939, 1e-05
    %v956 = vmax.f32 %v940, 1e-05
    %v957 = vmax.f32 %v941, 1e-05
    %v958 = vmax.f32 %v942, 1e-05
    %v959 = vmin.f32 %v943, 0.99999
    %v960 = vmin.f32 %v944, 0.99999
    %v961 = vmin.f32 %v945, 0.99999
    %v962 = vmin.f32 %v946, 0.99999
    %v963 = vmin.f32 %v947, 0.99999
    %v964 = vmin.f32 %v948, 0.99999
    %v965 = vmin.f32 %v949, 0.99999
    %v966 = vmin.f32 %v950, 0.99999
    %v967 = vmin.f32 %v951, 0.99999
    %v968 = vmin.f32 %v952, 0.99999
    %v969 = vmin.f32 %v953, 0.99999
    %v970 = vmin.f32 %v954, 0.99999
    %v971 = vmin.f32 %v955, 0.99999
    %v972 = vmin.f32 %v956, 0.99999
    %v973 = vmin.f32 %v957, 0.99999
    %v974 = vmin.f32 %v958, 0.99999
    %v975 = vlog2.pop %v959
    %v976 = vmul.f32 %v975, 0.6931472
    %v977 = vlog2.pop %v960
    %v978 = vmul.f32 %v977, 0.6931472
    %v979 = vlog2.pop %v961
    %v980 = vmul.f32 %v979, 0.6931472
    %v981 = vlog2.pop %v962
    %v982 = vmul.f32 %v981, 0.6931472
    %v983 = vlog2.pop %v963
    %v984 = vmul.f32 %v983, 0.6931472
    %v985 = vlog2.pop %v964
    %v986 = vmul.f32 %v985, 0.6931472
    %v987 = vlog2.pop %v965
    %v988 = vmul.f32 %v987, 0.6931472
    %v989 = vlog2.pop %v966
    %v990 = vmul.f32 %v989, 0.6931472
    %v991 = vlog2.pop %v967
    %v992 = vmul.f32 %v991, 0.6931472
    %v993 = vlog2.pop %v968
    %v994 = vmul.f32 %v993, 0.6931472
    %v995 = vlog2.pop %v969
    %v996 = vmul.f32 %v995, 0.6931472
    %v997 = vlog2.pop %v970
    %v998 = vmul.f32 %v997, 0.6931472
    %v999 = vlog2.pop %v971
    %v1000 = vmul.f32 %v999, 0.6931472
    %v1001 = vlog2.pop %v972
    %v1002 = vmul.f32 %v1001, 0.6931472
    %v1003 = vlog2.pop %v973
    %v1004 = vmul.f32 %v1003, 0.6931472
    %v1005 = vlog2.pop %v974
    %v1006 = vmul.f32 %v1005, 0.6931472
    %v1007 = vsub.f32 0.0, %v976
    %v1008 = vsub.f32 0.0, %v978
    %v1009 = vsub.f32 0.0, %v980
    %v1010 = vsub.f32 0.0, %v982
    %v1011 = vsub.f32 0.0, %v984
    %v1012 = vsub.f32 0.0, %v986
    %v1013 = vsub.f32 0.0, %v988
    %v1014 = vsub.f32 0.0, %v990
    %v1015 = vsub.f32 0.0, %v992
    %v1016 = vsub.f32 0.0, %v994
    %v1017 = vsub.f32 0.0, %v996
    %v1018 = vsub.f32 0.0, %v998
    %v1019 = vsub.f32 0.0, %v1000
    %v1020 = vsub.f32 0.0, %v1002
    %v1021 = vsub.f32 0.0, %v1004
    %v1022 = vsub.f32 0.0, %v1006
    %v1023 = vadd.f32 %v1007, %v1008
    %v1024 = vadd.f32 %v1023, %v1009
    %v1025 = vadd.f32 %v1024, %v1010
    %v1026 = vadd.f32 %v1025, %v1011
    %v1027 = vadd.f32 %v1026, %v1012
    %v1028 = vadd.f32 %v1027, %v1013
    %v1029 = vadd.f32 %v1028, %v1014
    %v1030 = vadd.f32 %v1029, %v1015
    %v1031 = vadd.f32 %v1030, %v1016
    %v1032 = vadd.f32 %v1031, %v1017
    %v1033 = vadd.f32 %v1032, %v1018
    %v1034 = vadd.f32 %v1033, %v1019
    %v1035 = vadd.f32 %v1034, %v1020
    %v1036 = vadd.f32 %v1035, %v1021
    %v1037 = vadd.f32 %v1036, %v1022
    %v1038 = vrot.slane %v1037, 4
    %v1039 = vadd.f32 %v1037, %v1038
    %v1040 = vrot.slane %v1039, 2
    %v1041 = vadd.f32 %v1039, %v1040
    %v1042 = vrot.slane %v1041, 1
    %v1043 = vadd.f32 %v1041, %v1042
    %v1044 = vmul.f32 %v1043, 0.0078125
    %vm1045 = vcmask 0
    %1046 = vst.msk [vmem:[#allocation3] sm:$0x1] %vm1045, %v1044
    // Predicated region
    $region22: #{tpu_custom_call.1} parent=1 // pred_check
      _
    $region23: #{tpu_custom_call.1} parent=1 // pred_check_branch
      %1048 = sbr.rel (0) target = $region25
    $region24: #{tpu_custom_call.1} parent=1 // pred_region
      _
    $region25: #{tpu_custom_call.1} parent=1 // pred_fallthru
      _
    // Predicated region
    $region26: #{tpu_custom_call.1} parent=1 // pred_check
      _
    $region27: #{tpu_custom_call.1} parent=1 // pred_check_branch
      %1050 = sbr.rel (0) target = $region29
    $region28: #{tpu_custom_call.1} parent=1 // pred_region
      %s1052 = ssub.s32 16, 16
      %1053 = vsyncadd [#allocation4], %s1052
      %s1055 = sshll.u32 [#allocation3], 4
      %s1056 = int_to_ptr.vmem [resolvable:$true] %s1055
      %1058 = dma.vmem_to_hbm [thread:$0]  %s1056, 16, %s6, [#allocation4]
    $region29: #{tpu_custom_call.1} parent=1 // pred_fallthru
      _
    // Predicated region
    $region30: #{tpu_custom_call.1} parent=1 // pred_check
      _
    $region31: #{tpu_custom_call.1} parent=1 // pred_check_branch
      %1060 = sbr.rel (0) target = $region33
    $region32: #{tpu_custom_call.1} parent=1 // pred_region
      _
    $region33: #{tpu_custom_call.1} parent=1 // pred_fallthru
      _
    // Predicated region
    $region34: #{tpu_custom_call.1} parent=1 // pred_check
      _
    $region35: #{tpu_custom_call.1} parent=1 // pred_check_branch
      %1062 = sbr.rel (0) target = $region37
    $region36: #{tpu_custom_call.1} parent=1 // pred_region
      %1063 = dma.done [#allocation4], 16
    $region37: #{tpu_custom_call.1} parent=1 // pred_fallthru
      _
    %1064 = vsyncpa [#allocation4], 1

</llo_original>
